<compile_context>
chip_gen: v5e
topology: v5e:2x2
jax: 0.10.0
libtpu: 0.0.40
codegen_flags: <defaults>
</compile_context>

<pallas_src>
import math

import jax
import jax.numpy as jnp
from jax.experimental import pallas as pl
from jax.experimental.pallas import tpu as pltpu


# ----------------------------------------------------------------------------
# Stage 1: channel-wise max-pool over points for src and tgt (mem-bound stream).
# ----------------------------------------------------------------------------
def _maxpool_kernel(src_ref, tgt_ref, out_ref):
    # src_ref / tgt_ref: (bt, E, N) blocks; reduce over points (lane axis, XLU).
    # out_ref: (bt, 2, E) lane-dense slab -> reshape(B, 2E) == torch.cat(dim=1)
    # of the pooled halves.
    out_ref[:, 0, :] = jnp.max(src_ref[...], axis=-1).astype(out_ref.dtype)
    out_ref[:, 1, :] = jnp.max(tgt_ref[...], axis=-1).astype(out_ref.dtype)


# ----------------------------------------------------------------------------
# Stage 2: batched 3-layer MLP (BN folded) + packed rot/trans projection.
# Row form: x (B, 2E) @ W (in, out) + b (1, out); all GEMMs have M = B.
# ----------------------------------------------------------------------------
def _mlp_proj_kernel(x_ref, w1_ref, b1_ref, w2_ref, b2_ref, w3_ref, b3_ref,
                     wp_ref, bp_ref, out_ref):
    h = jnp.dot(x_ref[...], w1_ref[...], preferred_element_type=jnp.float32)
    h = jnp.maximum(h + b1_ref[...], 0.0)
    h = jnp.dot(h, w2_ref[...], preferred_element_type=jnp.float32)
    h = jnp.maximum(h + b2_ref[...], 0.0)
    h = jnp.dot(h, w3_ref[...], preferred_element_type=jnp.float32)
    h = jnp.maximum(h + b3_ref[...], 0.0)
    # Packed projection: cols 0:4 = proj_rot, 4:7 = proj_trans, 7 = zero pad.
    out_ref[...] = (jnp.dot(h, wp_ref[...], preferred_element_type=jnp.float32)
                    + bp_ref[...])


# ----------------------------------------------------------------------------
# Host-side wrapper / glue.
# ----------------------------------------------------------------------------
def quat2mat(quat):
    """DCP-reference quaternion -> rotation matrix; columns are (w, x, y, z)."""
    w, x, y, z = quat[:, 0], quat[:, 1], quat[:, 2], quat[:, 3]
    w2, x2, y2, z2 = w * w, x * x, y * y, z * z
    wx, wy, wz = w * x, w * y, w * z
    xy, xz, yz = x * y, x * z, y * z
    rot = jnp.stack([w2 + x2 - y2 - z2, 2 * xy - 2 * wz, 2 * wy + 2 * xz,
                     2 * wz + 2 * xy, w2 - x2 + y2 - z2, 2 * yz - 2 * wx,
                     2 * xz - 2 * wy, 2 * wx + 2 * yz, w2 - x2 - y2 + z2],
                    axis=1)
    return rot.reshape(-1, 3, 3)


def _pick_batch_tile(B, E, N, itemsize, step_budget_bytes=24 << 20):
    """Largest divisor of B (<= 8) whose src+tgt block fits the per-step budget."""
    bt = 1
    for cand in range(1, min(B, 8) + 1):
        if B % cand == 0 and 2 * cand * E * N * itemsize <= step_budget_bytes:
            bt = cand
    return bt


def mlp_head_forward(src_embedding, tgt_embedding, params):
    """src_embedding, tgt_embedding: (B, emb_dims, N) f32 or bf16 (PyTorch layout)."""
    w1, b1, w2, b2, w3, b3, wp, bp = params
    B, E, N = src_embedding.shape
    itemsize = jnp.dtype(src_embedding.dtype).itemsize

    # --- Stage 1: pooled (B, 2, E) feature slab, grid over batch ("parallel"). ---
    bt = _pick_batch_tile(B, E, N, itemsize)
    step_bytes = 2 * bt * E * N * itemsize            # src + tgt blocks per step
    # Double-buffered blocks + slack; above v5e's 16 MiB default, under v7x's 64 MiB.
    vmem_limit = int(min(max(2 * step_bytes + (4 << 20), 32 << 20), 56 << 20))

    pooled = pl.pallas_call(
        _maxpool_kernel,
        out_shape=jax.ShapeDtypeStruct((B, 2, E), jnp.float32),
        grid_spec=pltpu.PrefetchScalarGridSpec(
            num_scalar_prefetch=0,
            grid=(B // bt,),
            in_specs=[pl.BlockSpec((bt, E, N), lambda b: (b, 0, 0)),
                      pl.BlockSpec((bt, E, N), lambda b: (b, 0, 0))],
            out_specs=pl.BlockSpec((bt, 2, E), lambda b: (b, 0, 0)),
        ),
        compiler_params=pltpu.CompilerParams(
            dimension_semantics=("parallel",),
            vmem_limit_bytes=vmem_limit),
        cost_estimate=pl.CostEstimate(
            flops=2 * B * E * N,
            transcendentals=0,
            bytes_accessed=2 * B * E * N * itemsize + B * 2 * E * 4),
    )(src_embedding, tgt_embedding)

    # (B, 2, E) -> (B, 2E): [src-pool | tgt-pool] == torch.cat((src, tgt), dim=1).
    pooled_flat = pooled.reshape(B, 2 * E)

    # --- Stage 2: whole-batch MLP + packed projection in one tiny pallas_call. ---
    weight_args = (w1, b1, w2, b2, w3, b3, wp, bp)
    mlp_flops = 2 * B * (2 * E * (E // 2) + (E // 2) * (E // 4)
                         + (E // 4) * (E // 8) + (E // 8) * 8)
    mlp_bytes = 4 * (pooled_flat.size + sum(int(a.size) for a in weight_args) + B * 8)

    feat = pl.pallas_call(
        _mlp_proj_kernel,
        out_shape=jax.ShapeDtypeStruct((B, 8), jnp.float32),
        grid_spec=pltpu.PrefetchScalarGridSpec(
            num_scalar_prefetch=0,
            grid=(1,),
            in_specs=[pl.BlockSpec(a.shape, lambda i: (0, 0))
                      for a in (pooled_flat,) + weight_args],
            out_specs=pl.BlockSpec((B, 8), lambda i: (0, 0)),
        ),
        compiler_params=pltpu.CompilerParams(
            dimension_semantics=("arbitrary",)),
        cost_estimate=pl.CostEstimate(
            flops=mlp_flops, transcendentals=0, bytes_accessed=mlp_bytes),
    )(pooled_flat, *weight_args)

    rot_raw = feat[:, 0:4]
    translation = feat[:, 4:7]
    # Tiny (B, 4) epilogue kept in plain JAX (matches the reference: no epsilon).
    rotation_q = rot_raw / jnp.linalg.norm(rot_raw, axis=1, keepdims=True)
    return quat2mat(rotation_q), translation


# ----------------------------------------------------------------------------
# Parameter construction: PyTorch-layout Linear weights, BN folded, row form.
# ----------------------------------------------------------------------------
def make_mlp_head_params(emb_dims, key, bn_stats=(None, None, None)):
    E = emb_dims
    keys = jax.random.split(key, 5)

    def linear(k, cin, cout):
        w = (1.0 / math.sqrt(cin)) * jax.random.normal(k, (cout, cin), jnp.float32)
        b = 0.01 * jax.random.normal(jax.random.fold_in(k, 1), (cout,), jnp.float32)
        return w, b

    def fold_bn(w, b, cout, stats=None, eps=1e-5):
        # BatchNorm1d eval mode.  `stats` = (gamma, beta, running_mean, running_var)
        # from a real checkpoint; defaults reproduce an untrained eval-mode BN.
        if stats is None:
            gamma = jnp.ones((cout,), jnp.float32)
            beta = jnp.zeros((cout,), jnp.float32)
            rmean = jnp.zeros((cout,), jnp.float32)
            rvar = jnp.ones((cout,), jnp.float32)
        else:
            gamma, beta, rmean, rvar = stats
        s = gamma / jnp.sqrt(rvar + eps)
        return w * s[:, None], s * (b - rmean) + beta

    w1, b1 = fold_bn(*linear(keys[0], 2 * E, E // 2), E // 2, bn_stats[0])
    w2, b2 = fold_bn(*linear(keys[1], E // 2, E // 4), E // 4, bn_stats[1])
    w3, b3 = fold_bn(*linear(keys[2], E // 4, E // 8), E // 8, bn_stats[2])
    wr, br = linear(keys[3], E // 8, 4)   # proj_rot
    wt, bt = linear(keys[4], E // 8, 3)   # proj_trans

    # Pack proj_rot + proj_trans (+ one zero pad row) into a single matmul.
    wp = jnp.concatenate([wr, wt, jnp.zeros((1, E // 8), jnp.float32)], axis=0)
    bp = jnp.concatenate([br, bt, jnp.zeros((1,), jnp.float32)], axis=0)

    row = lambda v: v.reshape(1, -1)      # biases as lane-dense (1, out) rows
    t = lambda w: w.T                     # PyTorch (out, in) -> row-form (in, out)
    return (t(w1), row(b1), t(w2), row(b2), t(w3), row(b3), t(wp), row(bp))


if __name__ == "__main__":
    B, EMB_DIMS, N = 2, 64, 16
    key = jax.random.PRNGKey(0)
    kp, ks, kt = jax.random.split(key, 3)

    params = make_mlp_head_params(EMB_DIMS, kp)
    src_embedding = jax.random.normal(ks, (B, EMB_DIMS, N), dtype=jnp.float32)
    tgt_embedding = jax.random.normal(kt, (B, EMB_DIMS, N), dtype=jnp.float32)

    rotation, translation = mlp_head_forward(src_embedding, tgt_embedding, params)
    jax.block_until_ready((rotation, translation))

    assert rotation.shape == (B, 3, 3)
    assert translation.shape == (B, 3)

    # Pure-JAX reference of the same forward (BN already folded into params).
    w1, b1, w2, b2, w3, b3, wp, bp = params
    pooled_ref = jnp.concatenate([src_embedding.max(-1), tgt_embedding.max(-1)],
                                 axis=1)
    h = jnp.maximum(pooled_ref @ w1 + b1, 0.0)
    h = jnp.maximum(h @ w2 + b2, 0.0)
    h = jnp.maximum(h @ w3 + b3, 0.0)
    feat_ref = h @ wp + bp
    q_ref = feat_ref[:, :4]
    q_ref = q_ref / jnp.linalg.norm(q_ref, axis=1, keepdims=True)
    assert jnp.allclose(rotation, quat2mat(q_ref), atol=1e-4)
    assert jnp.allclose(translation, feat_ref[:, 4:7], atol=1e-4)

    # quat2mat of a unit quaternion must be a proper rotation: R R^T = I, det = 1.
    rtr = rotation @ jnp.swapaxes(rotation, 1, 2)
    assert jnp.allclose(rtr, jnp.eye(3, dtype=jnp.float32)[None], atol=1e-4)
    assert jnp.allclose(jnp.linalg.det(rotation), 1.0, atol=1e-4)
    print("KERNEL_OK")
</pallas_src>

<mosaic_0001>
module attributes {stable_mosaic.version = 11 : i64} {
  func.func @_maxpool_kernel(%arg0: i32, %arg1: memref<2x64x16xf32, #tpu.memory_space<vmem>>, %arg2: memref<2x64x16xf32, #tpu.memory_space<vmem>>, %arg3: memref<2x2x64xf32, #tpu.memory_space<vmem>>) attributes {dimension_semantics = [#tpu.dimension_semantics<parallel>], iteration_bounds = array<i64: 1>, scalar_prefetch = 0 : i64, scratch_operands = 0 : i64, tpu.core_type = #tpu.core_type<tc>, window_params = [{transform_indices = @transform_0, window_bounds = array<i64: 2, 64, 16>}, {transform_indices = @transform_1, window_bounds = array<i64: 2, 64, 16>}, {transform_indices = @transform_2, window_bounds = array<i64: 2, 2, 64>}]} {
    %c0 = arith.constant 0 : index
    %c0_0 = arith.constant 0 : index
    %c0_1 = arith.constant 0 : index
    %0 = vector.load %arg1[%c0, %c0_0, %c0_1] : memref<2x64x16xf32, #tpu.memory_space<vmem>>, vector<2x64x16xf32>
    %cst = arith.constant dense<0xFF800000> : vector<2x64xf32>
    %1 = vector.multi_reduction <maximumf>, %0, %cst [2] : vector<2x64x16xf32> to vector<2x64xf32>
    %c0_2 = arith.constant 0 : index
    %c0_3 = arith.constant 0 : index
    %c0_4 = arith.constant 0 : index
    %2 = vector.load %arg3[%c0_2, %c0_3, %c0_4] : memref<2x2x64xf32, #tpu.memory_space<vmem>>, vector<2x1x64xf32>
    %3 = vector.shape_cast %2 : vector<2x1x64xf32> to vector<2x64xf32>
    %4 = vector.shape_cast %1 : vector<2x64xf32> to vector<2x1x64xf32>
    tpu.vector_store %arg3[%c0_2, %c0_3, %c0_4], %4 {strides = array<i32>} : memref<2x2x64xf32, #tpu.memory_space<vmem>>, vector<2x1x64xf32>,
    %c0_5 = arith.constant 0 : index
    %c0_6 = arith.constant 0 : index
    %c0_7 = arith.constant 0 : index
    %5 = vector.load %arg2[%c0_5, %c0_6, %c0_7] : memref<2x64x16xf32, #tpu.memory_space<vmem>>, vector<2x64x16xf32>
    %cst_8 = arith.constant dense<0xFF800000> : vector<2x64xf32>
    %6 = vector.multi_reduction <maximumf>, %5, %cst_8 [2] : vector<2x64x16xf32> to vector<2x64xf32>
    %c0_9 = arith.constant 0 : index
    %c1 = arith.constant 1 : index
    %c0_10 = arith.constant 0 : index
    %7 = vector.load %arg3[%c0_9, %c1, %c0_10] : memref<2x2x64xf32, #tpu.memory_space<vmem>>, vector<2x1x64xf32>
    %8 = vector.shape_cast %7 : vector<2x1x64xf32> to vector<2x64xf32>
    %9 = vector.shape_cast %6 : vector<2x64xf32> to vector<2x1x64xf32>
    tpu.vector_store %arg3[%c0_9, %c1, %c0_10], %9 {strides = array<i32>} : memref<2x2x64xf32, #tpu.memory_space<vmem>>, vector<2x1x64xf32>,
    return
  }
  func.func @transform_0(%arg0: i32) -> (i32, i32, i32) {
    %c0_i32 = arith.constant 0 : i32
    %c0_i32_0 = arith.constant 0 : i32
    %c0_i32_1 = arith.constant 0 : i32
    return %arg0, %c0_i32, %c0_i32_0 : i32, i32, i32
  }
  func.func @transform_1(%arg0: i32) -> (i32, i32, i32) {
    %c0_i32 = arith.constant 0 : i32
    %c0_i32_0 = arith.constant 0 : i32
    %c0_i32_1 = arith.constant 0 : i32
    return %arg0, %c0_i32, %c0_i32_0 : i32, i32, i32
  }
  func.func @transform_2(%arg0: i32) -> (i32, i32, i32) {
    %c0_i32 = arith.constant 0 : i32
    %c0_i32_0 = arith.constant 0 : i32
    %c0_i32_1 = arith.constant 0 : i32
    return %arg0, %c0_i32, %c0_i32_0 : i32, i32, i32
  }
}

</mosaic_0001>

<llo_original>
// kernel: tpu_custom_call.1
$region0: #{tpu_custom_call.1}
  #allocation0 [shape = 'u32[]', space=smem, size = 0x4, offset = 0x4, fixed_abs, tag = 'smem constant byte address 0x4 - core index']
  #allocation1 [shape = 'u32[72,128]{1,0:T(1,128)}', space=vmem, size = 0x9000, scoped, tag = 'internal scratch']
  %s0 = inlined_call_operand.vmem [shape: f32[2,64,16], index: 0, kind: input, shape index: {}]
  %s1 = inlined_call_operand.vmem [shape: f32[2,64,16], index: 1, kind: input, shape index: {}]
  %s2 = inlined_call_operand.hbm [shape: f32[2,2,64], index: 2, kind: output, shape index: {}]
  %s3 = sld [smem:[#allocation0]]
  $region18: #{tpu_custom_call.1} parent=0
    _
  %s5 = ssub.s32 1, %s3
  %s6 = scalar_select 0, %s5, %s3
  $region1: #{tpu_custom_call.1} parent=0
    #allocation2 [shape = 'u8[2048]{0}', space=vmem, size = 0x800, scoped, tag = 'output window, operand 0, single buffered']
    #allocation3 [shape = 's32[1]{0}', space=sflag, size = 0x4, scoped, tag = 'scoped memory for tpu_custom_call.1']
    %7 = vsyncpa [#allocation3], 0
    // Predicated region
    $region2: #{tpu_custom_call.1} parent=1 // pred_check
      _
    $region3: #{tpu_custom_call.1} parent=1 // pred_check_branch
      %9 = sbr.rel (0) target = $region5
    $region4: #{tpu_custom_call.1} parent=1 // pred_region
      _
    $region5: #{tpu_custom_call.1} parent=1 // pred_fallthru
      _
    // Predicated region
    $region6: #{tpu_custom_call.1} parent=1 // pred_check
      _
    $region7: #{tpu_custom_call.1} parent=1 // pred_check_branch
      %11 = sbr.rel (0) target = $region9
    $region8: #{tpu_custom_call.1} parent=1 // pred_region
      _
    $region9: #{tpu_custom_call.1} parent=1 // pred_fallthru
      _
    %v12 = vld [vmem:[%s0] sm:$0xff]
    %v13 = vld [vmem:[%s0 + $0x8] sm:$0xff]
    %v14 = vld [vmem:[%s0 + $0x10] sm:$0xff]
    %v15 = vld [vmem:[%s0 + $0x18] sm:$0xff]
    %v16 = vld [vmem:[%s0 + $0x20] sm:$0xff]
    %v17 = vld [vmem:[%s0 + $0x28] sm:$0xff]
    %v18 = vld [vmem:[%s0 + $0x30] sm:$0xff]
    %v19 = vld [vmem:[%s0 + $0x38] sm:$0xff]
    %v20 = vld [vmem:[%s0 + $0x40] sm:$0xff]
    %v21 = vld [vmem:[%s0 + $0x48] sm:$0xff]
    %v22 = vld [vmem:[%s0 + $0x50] sm:$0xff]
    %v23 = vld [vmem:[%s0 + $0x58] sm:$0xff]
    %v24 = vld [vmem:[%s0 + $0x60] sm:$0xff]
    %v25 = vld [vmem:[%s0 + $0x68] sm:$0xff]
    %v26 = vld [vmem:[%s0 + $0x70] sm:$0xff]
    %v27 = vld [vmem:[%s0 + $0x78] sm:$0xff]
    %vm28 = vcmask 130048
    %v29 = vsel %vm28, %v12, -inf
    %30 = vmax.xlane.f32.xlu0 %v29
    %v31 = vpop.xlane.xlu0 %30
    %v32 = vsel %vm28, %v13, -inf
    %33 = vmax.xlane.f32.xlu0 %v32
    %v34 = vpop.xlane.xlu0 %33
    %v35 = vsel %vm28, %v14, -inf
    %36 = vmax.xlane.f32.xlu0 %v35
    %v37 = vpop.xlane.xlu0 %36
    %v38 = vsel %vm28, %v15, -inf
    %39 = vmax.xlane.f32.xlu0 %v38
    %v40 = vpop.xlane.xlu0 %39
    %v41 = vsel %vm28, %v16, -inf
    %42 = vmax.xlane.f32.xlu0 %v41
    %v43 = vpop.xlane.xlu0 %42
    %v44 = vsel %vm28, %v17, -inf
    %45 = vmax.xlane.f32.xlu0 %v44
    %v46 = vpop.xlane.xlu0 %45
    %v47 = vsel %vm28, %v18, -inf
    %48 = vmax.xlane.f32.xlu0 %v47
    %v49 = vpop.xlane.xlu0 %48
    %v50 = vsel %vm28, %v19, -inf
    %51 = vmax.xlane.f32.xlu0 %v50
    %v52 = vpop.xlane.xlu0 %51
    %v53 = vsel %vm28, %v20, -inf
    %54 = vmax.xlane.f32.xlu0 %v53
    %v55 = vpop.xlane.xlu0 %54
    %v56 = vsel %vm28, %v21, -inf
    %57 = vmax.xlane.f32.xlu0 %v56
    %v58 = vpop.xlane.xlu0 %57
    %v59 = vsel %vm28, %v22, -inf
    %60 = vmax.xlane.f32.xlu0 %v59
    %v61 = vpop.xlane.xlu0 %60
    %v62 = vsel %vm28, %v23, -inf
    %63 = vmax.xlane.f32.xlu0 %v62
    %v64 = vpop.xlane.xlu0 %63
    %v65 = vsel %vm28, %v24, -inf
    %66 = vmax.xlane.f32.xlu0 %v65
    %v67 = vpop.xlane.xlu0 %66
    %v68 = vsel %vm28, %v25, -inf
    %69 = vmax.xlane.f32.xlu0 %v68
    %v70 = vpop.xlane.xlu0 %69
    %v71 = vsel %vm28, %v26, -inf
    %72 = vmax.xlane.f32.xlu0 %v71
    %v73 = vpop.xlane.xlu0 %72
    %v74 = vsel %vm28, %v27, -inf
    %75 = vmax.xlane.f32.xlu0 %v74
    %v76 = vpop.xlane.xlu0 %75
    %v93 = vlaneseq
    %v94 = vand.u32 %v93, 127
    %v95 = vperm.slane %v31, %v94
    %v96 = vadd.s32 %v94, 4294967288
    %v97 = vperm.slane %v34, %v96
    %vm98 = vcmask 130112
    %v99 = vsel %vm98, %v97, %v95
    %v100 = vadd.s32 %v94, 4294967280
    %v101 = vperm.slane %v37, %v100
    %vm102 = vcmask 195712
    %v103 = vsel %vm102, %v101, %v99
    %v104 = vadd.s32 %v94, 4294967272
    %v105 = vperm.slane %v40, %v104
    %vm106 = vcmask 261312
    %v107 = vsel %vm106, %v105, %v103
    %v108 = vadd.s32 %v94, 4294967264
    %v109 = vperm.slane %v43, %v108
    %vm110 = vcmask 326912
    %v111 = vsel %vm110, %v109, %v107
    %v112 = vadd.s32 %v94, 4294967256
    %v113 = vperm.slane %v46, %v112
    %vm114 = vcmask 392512
    %v115 = vsel %vm114, %v113, %v111
    %v116 = vadd.s32 %v94, 4294967248
    %v117 = vperm.slane %v49, %v116
    %vm118 = vcmask 458112
    %v119 = vsel %vm118, %v117, %v115
    %v120 = vadd.s32 %v94, 4294967240
    %v121 = vperm.slane %v52, %v120
    %vm122 = vcmask 523712
    %v123 = vsel %vm122, %v121, %v119
    %v124 = vperm.slane %v55, %v94
    %v125 = vperm.slane %v58, %v96
    %v126 = vsel %vm98, %v125, %v124
    %v127 = vperm.slane %v61, %v100
    %v128 = vsel %vm102, %v127, %v126
    %v129 = vperm.slane %v64, %v104
    %v130 = vsel %vm106, %v129, %v128
    %v131 = vperm.slane %v67, %v108
    %v132 = vsel %vm110, %v131, %v130
    %v133 = vperm.slane %v70, %v112
    %v134 = vsel %vm114, %v133, %v132
    %v135 = vperm.slane %v73, %v116
    %v136 = vsel %vm118, %v135, %v134
    %v137 = vperm.slane %v76, %v120
    %v138 = vsel %vm122, %v137, %v136
    %vm141 = vcmask 516096
    %142 = vst.msk [vmem:[#allocation2] sm:$0x1] %vm141, %v123
    %143 = vst.msk [vmem:[#allocation2 + $0x2] sm:$0x1] %vm141, %v138
    %v144 = vld [vmem:[%s1] sm:$0xff]
    %v145 = vld [vmem:[%s1 + $0x8] sm:$0xff]
    %v146 = vld [vmem:[%s1 + $0x10] sm:$0xff]
    %v147 = vld [vmem:[%s1 + $0x18] sm:$0xff]
    %v148 = vld [vmem:[%s1 + $0x20] sm:$0xff]
    %v149 = vld [vmem:[%s1 + $0x28] sm:$0xff]
    %v150 = vld [vmem:[%s1 + $0x30] sm:$0xff]
    %v151 = vld [vmem:[%s1 + $0x38] sm:$0xff]
    %v152 = vld [vmem:[%s1 + $0x40] sm:$0xff]
    %v153 = vld [vmem:[%s1 + $0x48] sm:$0xff]
    %v154 = vld [vmem:[%s1 + $0x50] sm:$0xff]
    %v155 = vld [vmem:[%s1 + $0x58] sm:$0xff]
    %v156 = vld [vmem:[%s1 + $0x60] sm:$0xff]
    %v157 = vld [vmem:[%s1 + $0x68] sm:$0xff]
    %v158 = vld [vmem:[%s1 + $0x70] sm:$0xff]
    %v159 = vld [vmem:[%s1 + $0x78] sm:$0xff]
    %v160 = vsel %vm28, %v144, -inf
    %161 = vmax.xlane.f32.xlu0 %v160
    %v162 = vpop.xlane.xlu0 %161
    %v163 = vsel %vm28, %v145, -inf
    %164 = vmax.xlane.f32.xlu0 %v163
    %v165 = vpop.xlane.xlu0 %164
    %v166 = vsel %vm28, %v146, -inf
    %167 = vmax.xlane.f32.xlu0 %v166
    %v168 = vpop.xlane.xlu0 %167
    %v169 = vsel %vm28, %v147, -inf
    %170 = vmax.xlane.f32.xlu0 %v169
    %v171 = vpop.xlane.xlu0 %170
    %v172 = vsel %vm28, %v148, -inf
    %173 = vmax.xlane.f32.xlu0 %v172
    %v174 = vpop.xlane.xlu0 %173
    %v175 = vsel %vm28, %v149, -inf
    %176 = vmax.xlane.f32.xlu0 %v175
    %v177 = vpop.xlane.xlu0 %176
    %v178 = vsel %vm28, %v150, -inf
    %179 = vmax.xlane.f32.xlu0 %v178
    %v180 = vpop.xlane.xlu0 %179
    %v181 = vsel %vm28, %v151, -inf
    %182 = vmax.xlane.f32.xlu0 %v181
    %v183 = vpop.xlane.xlu0 %182
    %v184 = vsel %vm28, %v152, -inf
    %185 = vmax.xlane.f32.xlu0 %v184
    %v186 = vpop.xlane.xlu0 %185
    %v187 = vsel %vm28, %v153, -inf
    %188 = vmax.xlane.f32.xlu0 %v187
    %v189 = vpop.xlane.xlu0 %188
    %v190 = vsel %vm28, %v154, -inf
    %191 = vmax.xlane.f32.xlu0 %v190
    %v192 = vpop.xlane.xlu0 %191
    %v193 = vsel %vm28, %v155, -inf
    %194 = vmax.xlane.f32.xlu0 %v193
    %v195 = vpop.xlane.xlu0 %194
    %v196 = vsel %vm28, %v156, -inf
    %197 = vmax.xlane.f32.xlu0 %v196
    %v198 = vpop.xlane.xlu0 %197
    %v199 = vsel %vm28, %v157, -inf
    %200 = vmax.xlane.f32.xlu0 %v199
    %v201 = vpop.xlane.xlu0 %200
    %v202 = vsel %vm28, %v158, -inf
    %203 = vmax.xlane.f32.xlu0 %v202
    %v204 = vpop.xlane.xlu0 %203
    %v205 = vsel %vm28, %v159, -inf
    %206 = vmax.xlane.f32.xlu0 %v205
    %v207 = vpop.xlane.xlu0 %206
    %v224 = vperm.slane %v162, %v94
    %v225 = vperm.slane %v165, %v96
    %v226 = vsel %vm98, %v225, %v224
    %v227 = vperm.slane %v168, %v100
    %v228 = vsel %vm102, %v227, %v226
    %v229 = vperm.slane %v171, %v104
    %v230 = vsel %vm106, %v229, %v228
    %v231 = vperm.slane %v174, %v108
    %v232 = vsel %vm110, %v231, %v230
    %v233 = vperm.slane %v177, %v112
    %v234 = vsel %vm114, %v233, %v232
    %v235 = vperm.slane %v180, %v116
    %v236 = vsel %vm118, %v235, %v234
    %v237 = vperm.slane %v183, %v120
    %v238 = vsel %vm122, %v237, %v236
    %v239 = vperm.slane %v186, %v94
    %v240 = vperm.slane %v189, %v96
    %v241 = vsel %vm98, %v240, %v239
    %v242 = vperm.slane %v192, %v100
    %v243 = vsel %vm102, %v242, %v241
    %v244 = vperm.slane %v195, %v104
    %v245 = vsel %vm106, %v244, %v243
    %v246 = vperm.slane %v198, %v108
    %v247 = vsel %vm110, %v246, %v245
    %v248 = vperm.slane %v201, %v112
    %v249 = vsel %vm114, %v248, %v247
    %v250 = vperm.slane %v204, %v116
    %v251 = vsel %vm118, %v250, %v249
    %v252 = vperm.slane %v207, %v120
    %v253 = vsel %vm122, %v252, %v251
    %256 = vst.msk [vmem:[#allocation2 + $0x1] sm:$0x1] %vm141, %v238
    %257 = vst.msk [vmem:[#allocation2 + $0x3] sm:$0x1] %vm141, %v253
    // Predicated region
    $region10: #{tpu_custom_call.1} parent=1 // pred_check
      _
    $region11: #{tpu_custom_call.1} parent=1 // pred_check_branch
      %259 = sbr.rel (0) target = $region13
    $region12: #{tpu_custom_call.1} parent=1 // pred_region
      %261 = vsyncadd [#allocation3], 0
      %s262 = sshll.u32 [#allocation2], 4
      %s263 = int_to_ptr.vmem [resolvable:$true] %s262
      %s264 = sshll.u32 %s2, 4
      %s265 = int_to_ptr.hbm [resolvable:$true] %s264
      %270 = dma.vmem_to_hbm [thread:$0]  %s263, 64, %s265, [#allocation3], 32, 32, 2
    $region13: #{tpu_custom_call.1} parent=1 // pred_fallthru
      _
    // Predicated region
    $region14: #{tpu_custom_call.1} parent=1 // pred_check
      _
    $region15: #{tpu_custom_call.1} parent=1 // pred_check_branch
      %272 = sbr.rel (0) target = $region17
    $region16: #{tpu_custom_call.1} parent=1 // pred_region
      %274 = dma.done [#allocation3], 64
    $region17: #{tpu_custom_call.1} parent=1 // pred_fallthru
      _
    %275 = vsyncpa [#allocation3], 1

</llo_original>
